<compile_context>
chip_gen: v7x
topology: tpu7x:2x2x1
jax: 0.10.0
libtpu: 0.0.40
codegen_flags: <defaults>
</compile_context>

<pallas_src>
import functools

import jax
import jax.numpy as jnp
from jax.experimental import pallas as pl
from jax.experimental.pallas import tpu as pltpu


def _nodeselection_kernel(K, nv_ref, emb_ref, idx_ref, sel_ref):
    """One grid step == one batch element.

    nv_ref  : (1, N, 2T) float32   concatenated node features of this batch
    emb_ref : (M, 2T)    bf16/f32  memory-node embeddings
    idx_ref : (1, M, K)  int32     top-K node indices (out)
    sel_ref : (1, K*M, 2T) float32 gathered features, k-major rows (out)
    """
    nv = nv_ref[0]                       # (N, 2T) float32
    emb = emb_ref[...]                   # (M, 2T)
    N = nv.shape[0]
    M = emb.shape[0]

    # logits[m, n] = sum_t emb[m, t] * nv[n, t]  — single MXU dot, 2T-deep
    # contraction, bf16 operands (cast of nv is cheap VPU work), f32 accum.
    logits = jax.lax.dot_general(
        emb, nv.astype(emb.dtype),
        (((1,), (1,)), ((), ())),
        preferred_element_type=jnp.float32)                     # (M, N)

    # Plain row softmax (batch lives on the grid, N lives in lanes).
    row_max = jnp.max(logits, axis=-1, keepdims=True)
    ex = jnp.exp(logits - row_max)
    sm = ex / jnp.sum(ex, axis=-1, keepdims=True)                # (M, N) f32

    # Top-K per row via K iterations of masked argmax (K is a tiny static
    # int; ties resolve to the lowest index, like lax.top_k / torch.topk).
    col = jax.lax.broadcasted_iota(jnp.int32, (M, N), 1)
    neg_inf = jnp.float32(-jnp.inf)
    w = sm
    idx_cols = []                                                # K x (M, 1)
    for _k in range(K):
        cur_max = jnp.max(w, axis=-1, keepdims=True)             # (M, 1)
        cur_col = jnp.min(jnp.where(w == cur_max, col, N),
                          axis=-1, keepdims=True)                # (M, 1) int32
        idx_cols.append(cur_col)
        w = jnp.where(col == cur_col, neg_inf, w)                # knock out

    idx = jnp.concatenate(idx_cols, axis=-1)                     # (M, K)
    idx_ref[0] = idx.astype(idx_ref.dtype)

    # One-hot selection matrix (K*M, N), rows k-major, built with a single
    # broadcasted compare of the stacked winner column against a lane iota.
    win = jnp.concatenate(idx_cols, axis=0)                      # (K*M, 1)
    sel_col = jax.lax.broadcasted_iota(jnp.int32, (K * M, N), 1)
    onehot = (sel_col == win).astype(jnp.float32)                # (K*M, N)

    # Fused top-K feature gather: one MXU dot on the ORIGINAL f32 features,
    # producing a single lane-dense (K*M, 2T) slab.
    sel = jnp.dot(onehot, nv, preferred_element_type=jnp.float32)
    sel_ref[0] = sel.astype(sel_ref.dtype)


@functools.partial(jax.jit, static_argnames=("topk", "logits_dtype"))
def nodeselection_forward(node_feature, node_embeddings, topk,
                          logits_dtype=jnp.bfloat16):
    """JAX/Pallas equivalent of nodeselection.forward.

    Returns (selected_nodes_features=[sel1, sel2], batch_indices, indices),
    matching the PyTorch module's return signature.
    """
    nv1, nv2 = node_feature
    B, N, T = nv1.shape
    assert nv2.shape == (B, N, T)
    M, twoT = node_embeddings.shape
    assert twoT == 2 * T
    K = topk
    assert 1 <= K <= N, "topk must satisfy 1 <= K <= num_nodes"

    # Boundary-side layout plumbing: one concatenated feature tensor, one
    # (optionally bf16) embedding tensor.
    nvcat = jnp.concatenate([nv1, nv2], axis=-1)                 # (B, N, 2T)
    emb = node_embeddings.astype(logits_dtype)                   # (M, 2T)

    kernel = functools.partial(_nodeselection_kernel, K)

    idx_slab, sel_slab = pl.pallas_call(
        kernel,
        out_shape=(
            jax.ShapeDtypeStruct((B, M, K), jnp.int32),          # indices
            jax.ShapeDtypeStruct((B, K * M, 2 * T), jnp.float32),  # selected
        ),
        grid_spec=pltpu.PrefetchScalarGridSpec(
            num_scalar_prefetch=0,
            grid=(B,),                            # one batch per grid step
            in_specs=[
                pl.BlockSpec((1, N, 2 * T), lambda b: (b, 0, 0)),
                pl.BlockSpec((M, 2 * T), lambda b: (0, 0)),
            ],
            out_specs=[
                pl.BlockSpec((1, M, K), lambda b: (b, 0, 0)),
                pl.BlockSpec((1, K * M, 2 * T), lambda b: (b, 0, 0)),
            ],
        ),
        compiler_params=pltpu.CompilerParams(
            dimension_semantics=("parallel",)),
    )(nvcat, emb)

    indices = idx_slab                                           # (B, M, K)
    # Selected slab rows are k-major: reshape + cheap wrapper transpose.
    sel = sel_slab.reshape(B, K, M, 2 * T).transpose(0, 2, 1, 3)  # (B, M, K, 2T)
    selected1 = sel[..., :T]
    selected2 = sel[..., T:]
    batch_indices = jnp.broadcast_to(
        jnp.arange(B, dtype=indices.dtype)[:, None, None], (B, M, K))

    return [selected1, selected2], batch_indices, indices


if __name__ == "__main__":
    # Small shapes consistent with the module.
    B, N, T = 2, 16, 32          # batch, nodes, time_dim
    M, K = 8, 4                  # memory_node, topk

    key = jax.random.PRNGKey(0)
    k1, k2, k3 = jax.random.split(key, 3)
    nodevec1 = jax.random.normal(k1, (B, N, T), dtype=jnp.float32)
    nodevec2 = jax.random.normal(k2, (B, N, T), dtype=jnp.float32)
    node_embeddings = jax.random.normal(k3, (M, 2 * T), dtype=jnp.float32)

    sel_feats, batch_indices, indices = jax.block_until_ready(
        nodeselection_forward([nodevec1, nodevec2], node_embeddings, topk=K))
    sel1, sel2 = sel_feats

    assert sel1.shape == (B, M, K, T) and sel2.shape == (B, M, K, T)
    assert indices.shape == (B, M, K) and batch_indices.shape == (B, M, K)

    # Plain-JAX reference.  The kernel's logits matmul uses bf16 inputs with
    # f32 accumulation (MXU-native, per perf guidance); mirror that input
    # rounding here so the discrete top-K index comparison is deterministic.
    nv3 = jnp.concatenate([nodevec1, nodevec2], axis=-1)          # (B, N, 2T)
    logits_ref = jnp.einsum(
        "mt,bnt->bmn",
        node_embeddings.astype(jnp.bfloat16),
        nv3.astype(jnp.bfloat16),
        preferred_element_type=jnp.float32)
    supports_ref = jax.nn.softmax(logits_ref, axis=-1)
    _, topk_idx_ref = jax.lax.top_k(supports_ref, K)

    assert jnp.array_equal(indices, topk_idx_ref.astype(indices.dtype))
    assert jnp.array_equal(
        batch_indices,
        jnp.broadcast_to(jnp.arange(B, dtype=indices.dtype)[:, None, None],
                         (B, M, K)))
    assert bool(jnp.all((indices >= 0) & (indices < N)))

    # Selected features must equal indexing the ORIGINAL f32 features at the
    # kernel's indices.  The one-hot gather runs on f32 operands; the rtol
    # bound covers any reduced-precision pass the MXU may use for f32 inputs
    # (each output element is a single 1.0 * feature product).
    sel1_ref = jax.vmap(lambda x, i: x[i])(nodevec1, indices)
    sel2_ref = jax.vmap(lambda x, i: x[i])(nodevec2, indices)
    assert jnp.allclose(sel1, sel1_ref, rtol=3e-3, atol=1e-5)
    assert jnp.allclose(sel2, sel2_ref, rtol=3e-3, atol=1e-5)

    print("KERNEL_OK")
</pallas_src>

<mosaic_0001>
module attributes {stable_mosaic.version = 11 : i64} {
  func.func @_nodeselection_kernel(%arg0: i32, %arg1: memref<1x16x64xf32, #tpu.memory_space<vmem>>, %arg2: memref<8x64xbf16, #tpu.memory_space<vmem>>, %arg3: memref<1x8x4xi32, #tpu.memory_space<vmem>>, %arg4: memref<1x32x64xf32, #tpu.memory_space<vmem>>) attributes {dimension_semantics = [#tpu.dimension_semantics<parallel>], iteration_bounds = array<i64: 2>, scalar_prefetch = 0 : i64, scratch_operands = 0 : i64, tpu.core_type = #tpu.core_type<tc>, window_params = [{transform_indices = @transform_0, window_bounds = array<i64: 1, 16, 64>}, {pipeline_mode = #tpu.pipeline_mode<synchronous>, transform_indices = @transform_1, window_bounds = array<i64: 8, 64>}, {transform_indices = @transform_2, window_bounds = array<i64: 1, 8, 4>}, {transform_indices = @transform_3, window_bounds = array<i64: 1, 32, 64>}]} {
    %c0 = arith.constant 0 : index
    %c0_0 = arith.constant 0 : index
    %c0_1 = arith.constant 0 : index
    %0 = vector.load %arg1[%c0, %c0_0, %c0_1] : memref<1x16x64xf32, #tpu.memory_space<vmem>>, vector<1x16x64xf32>
    %1 = vector.shape_cast %0 : vector<1x16x64xf32> to vector<16x64xf32>
    %c0_2 = arith.constant 0 : index
    %c0_3 = arith.constant 0 : index
    %2 = vector.load %arg2[%c0_2, %c0_3] : memref<8x64xbf16, #tpu.memory_space<vmem>>, vector<8x64xbf16>
    %3 = arith.truncf %1 : vector<16x64xf32> to vector<16x64xbf16>
    %cst = arith.constant dense<0.000000e+00> : vector<8x16xf32>
    %4 = tpu.matmul %2, %3, %cst {dimension_numbers = #tpu.dot_dimension_numbers<[1], [1], [0], [0], [0, 0, 1, 0], [], []>} : vector<8x64xbf16>, vector<16x64xbf16>, vector<8x16xf32> -> vector<8x16xf32>
    %cst_4 = arith.constant dense<0xFF800000> : vector<8xf32>
    %5 = vector.multi_reduction <maximumf>, %4, %cst_4 [1] : vector<8x16xf32> to vector<8xf32>
    %6 = vector.shape_cast %5 : vector<8xf32> to vector<8x1xf32>
    %7 = vector.broadcast %6 : vector<8x1xf32> to vector<8x16xf32>
    %8 = arith.subf %4, %7 : vector<8x16xf32>
    %9 = math.exp %8 : vector<8x16xf32>
    %cst_5 = arith.constant dense<0.000000e+00> : vector<8xf32>
    %10 = vector.multi_reduction <add>, %9, %cst_5 [1] : vector<8x16xf32> to vector<8xf32>
    %11 = vector.shape_cast %10 : vector<8xf32> to vector<8x1xf32>
    %12 = vector.broadcast %11 : vector<8x1xf32> to vector<8x16xf32>
    %13 = arith.divf %9, %12 : vector<8x16xf32>
    %14 = tpu.iota {dimensions = array<i32: 1>} : vector<8x16xi32>
    %cst_6 = arith.constant dense<0xFF800000> : vector<8xf32>
    %15 = vector.multi_reduction <maximumf>, %13, %cst_6 [1] : vector<8x16xf32> to vector<8xf32>
    %16 = vector.shape_cast %15 : vector<8xf32> to vector<8x1xf32>
    %17 = vector.broadcast %16 : vector<8x1xf32> to vector<8x16xf32>
    %18 = arith.cmpf oeq, %13, %17 : vector<8x16xf32>
    %c16_i32 = arith.constant 16 : i32
    %19 = vector.broadcast %c16_i32 : i32 to vector<8x16xi32>
    %20 = arith.select %18, %14, %19 : vector<8x16xi1>, vector<8x16xi32>
    %cst_7 = arith.constant dense<2147483647> : vector<8xi32>
    %21 = vector.multi_reduction <minsi>, %20, %cst_7 [1] : vector<8x16xi32> to vector<8xi32>
    %22 = vector.shape_cast %21 : vector<8xi32> to vector<8x1xi32>
    %23 = vector.broadcast %22 : vector<8x1xi32> to vector<8x16xi32>
    %24 = arith.cmpi eq, %14, %23 : vector<8x16xi32>
    %cst_8 = arith.constant 0xFF800000 : f32
    %25 = vector.broadcast %cst_8 : f32 to vector<8x16xf32>
    %26 = arith.select %24, %25, %13 : vector<8x16xi1>, vector<8x16xf32>
    %cst_9 = arith.constant dense<0xFF800000> : vector<8xf32>
    %27 = vector.multi_reduction <maximumf>, %26, %cst_9 [1] : vector<8x16xf32> to vector<8xf32>
    %28 = vector.shape_cast %27 : vector<8xf32> to vector<8x1xf32>
    %29 = vector.broadcast %28 : vector<8x1xf32> to vector<8x16xf32>
    %30 = arith.cmpf oeq, %26, %29 : vector<8x16xf32>
    %c16_i32_10 = arith.constant 16 : i32
    %31 = vector.broadcast %c16_i32_10 : i32 to vector<8x16xi32>
    %32 = arith.select %30, %14, %31 : vector<8x16xi1>, vector<8x16xi32>
    %cst_11 = arith.constant dense<2147483647> : vector<8xi32>
    %33 = vector.multi_reduction <minsi>, %32, %cst_11 [1] : vector<8x16xi32> to vector<8xi32>
    %34 = vector.shape_cast %33 : vector<8xi32> to vector<8x1xi32>
    %35 = vector.broadcast %34 : vector<8x1xi32> to vector<8x16xi32>
    %36 = arith.cmpi eq, %14, %35 : vector<8x16xi32>
    %cst_12 = arith.constant 0xFF800000 : f32
    %37 = vector.broadcast %cst_12 : f32 to vector<8x16xf32>
    %38 = arith.select %36, %37, %26 : vector<8x16xi1>, vector<8x16xf32>
    %cst_13 = arith.constant dense<0xFF800000> : vector<8xf32>
    %39 = vector.multi_reduction <maximumf>, %38, %cst_13 [1] : vector<8x16xf32> to vector<8xf32>
    %40 = vector.shape_cast %39 : vector<8xf32> to vector<8x1xf32>
    %41 = vector.broadcast %40 : vector<8x1xf32> to vector<8x16xf32>
    %42 = arith.cmpf oeq, %38, %41 : vector<8x16xf32>
    %c16_i32_14 = arith.constant 16 : i32
    %43 = vector.broadcast %c16_i32_14 : i32 to vector<8x16xi32>
    %44 = arith.select %42, %14, %43 : vector<8x16xi1>, vector<8x16xi32>
    %cst_15 = arith.constant dense<2147483647> : vector<8xi32>
    %45 = vector.multi_reduction <minsi>, %44, %cst_15 [1] : vector<8x16xi32> to vector<8xi32>
    %46 = vector.shape_cast %45 : vector<8xi32> to vector<8x1xi32>
    %47 = vector.broadcast %46 : vector<8x1xi32> to vector<8x16xi32>
    %48 = arith.cmpi eq, %14, %47 : vector<8x16xi32>
    %cst_16 = arith.constant 0xFF800000 : f32
    %49 = vector.broadcast %cst_16 : f32 to vector<8x16xf32>
    %50 = arith.select %48, %49, %38 : vector<8x16xi1>, vector<8x16xf32>
    %cst_17 = arith.constant dense<0xFF800000> : vector<8xf32>
    %51 = vector.multi_reduction <maximumf>, %50, %cst_17 [1] : vector<8x16xf32> to vector<8xf32>
    %52 = vector.shape_cast %51 : vector<8xf32> to vector<8x1xf32>
    %53 = vector.broadcast %52 : vector<8x1xf32> to vector<8x16xf32>
    %54 = arith.cmpf oeq, %50, %53 : vector<8x16xf32>
    %c16_i32_18 = arith.constant 16 : i32
    %55 = vector.broadcast %c16_i32_18 : i32 to vector<8x16xi32>
    %56 = arith.select %54, %14, %55 : vector<8x16xi1>, vector<8x16xi32>
    %cst_19 = arith.constant dense<2147483647> : vector<8xi32>
    %57 = vector.multi_reduction <minsi>, %56, %cst_19 [1] : vector<8x16xi32> to vector<8xi32>
    %58 = vector.shape_cast %57 : vector<8xi32> to vector<8x1xi32>
    %59 = tpu.concatenate %22, %34, %46, %58 in 1 : vector<8x1xi32>, vector<8x1xi32>, vector<8x1xi32>, vector<8x1xi32> -> vector<8x4xi32>
    %c0_20 = arith.constant 0 : index
    %c0_21 = arith.constant 0 : index
    %c0_22 = arith.constant 0 : index
    %60 = vector.load %arg3[%c0_20, %c0_21, %c0_22] : memref<1x8x4xi32, #tpu.memory_space<vmem>>, vector<1x8x4xi32>
    %61 = vector.shape_cast %60 : vector<1x8x4xi32> to vector<8x4xi32>
    %62 = vector.shape_cast %59 : vector<8x4xi32> to vector<1x8x4xi32>
    tpu.vector_store %arg3[%c0_20, %c0_21, %c0_22], %62 {strides = array<i32>} : memref<1x8x4xi32, #tpu.memory_space<vmem>>, vector<1x8x4xi32>,
    %63 = tpu.concatenate %22, %34, %46, %58 in 0 : vector<8x1xi32>, vector<8x1xi32>, vector<8x1xi32>, vector<8x1xi32> -> vector<32x1xi32>
    %64 = tpu.iota {dimensions = array<i32: 1>} : vector<32x16xi32>
    %65 = vector.broadcast %63 : vector<32x1xi32> to vector<32x16xi32>
    %66 = arith.cmpi eq, %64, %65 : vector<32x16xi32>
    %67 = arith.extui %66 : vector<32x16xi1> to vector<32x16xi32>
    %68 = arith.sitofp %67 : vector<32x16xi32> to vector<32x16xf32>
    %cst_23 = arith.constant dense<0.000000e+00> : vector<32x64xf32>
    %69 = tpu.matmul %68, %1, %cst_23 {dimension_numbers = #tpu.dot_dimension_numbers<[1], [0], [0], [1], [0, 0, 1, 1], [], []>} : vector<32x16xf32>, vector<16x64xf32>, vector<32x64xf32> -> vector<32x64xf32>
    %c0_24 = arith.constant 0 : index
    %c0_25 = arith.constant 0 : index
    %c0_26 = arith.constant 0 : index
    %70 = vector.load %arg4[%c0_24, %c0_25, %c0_26] : memref<1x32x64xf32, #tpu.memory_space<vmem>>, vector<1x32x64xf32>
    %71 = vector.shape_cast %70 : vector<1x32x64xf32> to vector<32x64xf32>
    %72 = vector.shape_cast %69 : vector<32x64xf32> to vector<1x32x64xf32>
    tpu.vector_store %arg4[%c0_24, %c0_25, %c0_26], %72 {strides = array<i32>} : memref<1x32x64xf32, #tpu.memory_space<vmem>>, vector<1x32x64xf32>,
    return
  }
  func.func @transform_0(%arg0: i32) -> (i32, i32, i32) {
    %c0_i32 = arith.constant 0 : i32
    %c0_i32_0 = arith.constant 0 : i32
    %c0_i32_1 = arith.constant 0 : i32
    return %arg0, %c0_i32, %c0_i32_0 : i32, i32, i32
  }
  func.func @transform_1(%arg0: i32) -> (i32, i32) {
    %c0_i32 = arith.constant 0 : i32
    %c0_i32_0 = arith.constant 0 : i32
    %c0_i32_1 = arith.constant 0 : i32
    return %c0_i32, %c0_i32_0 : i32, i32
  }
  func.func @transform_2(%arg0: i32) -> (i32, i32, i32) {
    %c0_i32 = arith.constant 0 : i32
    %c0_i32_0 = arith.constant 0 : i32
    %c0_i32_1 = arith.constant 0 : i32
    return %arg0, %c0_i32, %c0_i32_0 : i32, i32, i32
  }
  func.func @transform_3(%arg0: i32) -> (i32, i32, i32) {
    %c0_i32 = arith.constant 0 : i32
    %c0_i32_0 = arith.constant 0 : i32
    %c0_i32_1 = arith.constant 0 : i32
    return %arg0, %c0_i32, %c0_i32_0 : i32, i32, i32
  }
}

</mosaic_0001>

<llo_original>
// kernel: nodeselection_forward.1
$region0: #{nodeselection_forward.1}
  #allocation0 [shape = 'u32[]', space=smem, size = 0x4, offset = 0x4, fixed_abs, tag = 'smem constant byte address 0x4 - core index']
  #allocation1 [shape = 'u32[144,128]{1,0:T(1,128)}', space=vmem, size = 0x12000, scoped, tag = 'internal scratch']
  %s0 = inlined_call_operand.vmem [shape: f32[2,16,64], index: 0, kind: input, shape index: {}]
  %s1 = inlined_call_operand.vmem [shape: bf16[8,64], index: 1, kind: input, shape index: {}]
  %s2 = inlined_call_operand.vmem [shape: s32[2,8,4], index: 2, kind: output, shape index: {0}]
  %s3 = inlined_call_operand.vmem [shape: f32[2,32,64], index: 3, kind: output, shape index: {1}]
  %4 = xla_tuple %s2, %s3
  %s5 = sld [smem:[#allocation0]]
  $region49: #{nodeselection_forward.1} parent=0
    _
  %s7 = ssub.s32 1, %s5
  %s8 = scalar_select 0, %s7, %s5
  loop: start=0, step=1, limit=4
  $region2: #{nodeselection_forward.1} parent=0 // loop_pre_header
    _
  $region3: #{nodeselection_forward.1} parent=0 // loop_header
    %s10 = sphi 0, %s14
    %p11 = scmp.ge.s32.totalorder %s10, 4
    %s20 = sphi 0, %s22
    %s23 = sphi 0, %s20
    %s24 = sphi 0, %s23
    %s40 = sphi 0, %s24
    %s44 = sphi 0, %s44
    %s46 = sphi 0, %s44
    %s47 = sphi 0, %s46
    %s61 = sphi 0, %s47
    %s67 = sphi 0, %s69
    %s70 = sphi 0, %s67
    %s71 = sphi 0, %s70
    %s87 = sphi 0, %s71
    %s93 = sphi 0, %s95
    %s96 = sphi 0, %s93
    %s97 = sphi 0, %s96
    %s113 = sphi 0, %s97
  $region4: #{nodeselection_forward.1} parent=0 // loop_header_branch
    %13 = sbr.rel (%p11) target = $region8
  $region5: #{nodeselection_forward.1} parent=0 // loop_body
    %s15 = ssub.s32 %s10, 1
    %s16 = ssub.s32 %s10, 2
    %s17 = sadd.s32 %s10, 1
    %s18 = ssub.s32 %s10, %s17
    %p19 = scmp.eq.s32.totalorder %s18, 0
    %s21 = sadd.s32 %s20, 1
    %s22 = scalar_select %p19, %s20, %s21
    %p25 = pneg %p19
    %p26 = scmp.eq.s32.totalorder %s10, 1
    %p27 = por %p25, %p26
    %p28 = scmp.ne.s32.totalorder %s20, %s23
    %p29 = scmp.eq.s32.totalorder %s10, 0
    %p30 = por %p28, %p29
    %p31 = scmp.ne.s32.totalorder %s20, %s23
    %p32 = scmp.eq.s32.totalorder %s15, 1
    %p33 = por %p31, %p32
    %p34 = scmp.ne.s32.totalorder %s23, %s24
    %p35 = scmp.eq.s32.totalorder %s15, 0
    %p36 = por %p34, %p35
    %p37 = scmp.ne.s32.totalorder %s23, %s24
    %p38 = scmp.eq.s32.totalorder %s16, 1
    %p39 = por %p37, %p38
    %p41 = scmp.ne.s32.totalorder %s24, %s40
    %p42 = scmp.eq.s32.totalorder %s16, 0
    %p43 = por %p41, %p42
    %s45 = sadd.s32 %s44, 1
    %p48 = scmp.eq.s32.totalorder %s10, 1
    %p49 = scmp.ne.s32.totalorder %s44, %s46
    %p50 = scmp.eq.s32.totalorder %s10, 0
    %p51 = por %p49, %p50
    %p52 = scmp.ne.s32.totalorder %s44, %s46
    %p53 = scmp.eq.s32.totalorder %s15, 1
    %p54 = por %p52, %p53
    %p55 = scmp.ne.s32.totalorder %s46, %s47
    %p56 = scmp.eq.s32.totalorder %s15, 0
    %p57 = por %p55, %p56
    %p58 = scmp.ne.s32.totalorder %s46, %s47
    %p59 = scmp.eq.s32.totalorder %s16, 1
    %p60 = por %p58, %p59
    %p62 = scmp.ne.s32.totalorder %s47, %s61
    %p63 = scmp.eq.s32.totalorder %s16, 0
    %p64 = por %p62, %p63
    %s65 = ssub.s32 %s10, %s17
    %p66 = scmp.eq.s32.totalorder %s65, 0
    %s68 = sadd.s32 %s67, 1
    %s69 = scalar_select %p66, %s67, %s68
    %p72 = pneg %p66
    %p73 = scmp.eq.s32.totalorder %s10, 1
    %p74 = por %p72, %p73
    %p75 = scmp.ne.s32.totalorder %s67, %s70
    %p76 = scmp.eq.s32.totalorder %s10, 0
    %p77 = por %p75, %p76
    %p78 = scmp.ne.s32.totalorder %s67, %s70
    %p79 = scmp.eq.s32.totalorder %s15, 1
    %p80 = por %p78, %p79
    %p81 = scmp.ne.s32.totalorder %s70, %s71
    %p82 = scmp.eq.s32.totalorder %s15, 0
    %p83 = por %p81, %p82
    %p84 = scmp.ne.s32.totalorder %s70, %s71
    %p85 = scmp.eq.s32.totalorder %s16, 1
    %p86 = por %p84, %p85
    %p88 = scmp.ne.s32.totalorder %s71, %s87
    %p89 = scmp.eq.s32.totalorder %s16, 0
    %p90 = por %p88, %p89
    %s91 = ssub.s32 %s10, %s17
    %p92 = scmp.eq.s32.totalorder %s91, 0
    %s94 = sadd.s32 %s93, 1
    %s95 = scalar_select %p92, %s93, %s94
    %p98 = pneg %p92
    %p99 = scmp.eq.s32.totalorder %s10, 1
    %p100 = por %p98, %p99
    %p101 = scmp.ne.s32.totalorder %s93, %s96
    %p102 = scmp.eq.s32.totalorder %s10, 0
    %p103 = por %p101, %p102
    %p104 = scmp.ne.s32.totalorder %s93, %s96
    %p105 = scmp.eq.s32.totalorder %s15, 1
    %p106 = por %p104, %p105
    %p107 = scmp.ne.s32.totalorder %s96, %s97
    %p108 = scmp.eq.s32.totalorder %s15, 0
    %p109 = por %p107, %p108
    %p110 = scmp.ne.s32.totalorder %s96, %s97
    %p111 = scmp.eq.s32.totalorder %s16, 1
    %p112 = por %p110, %p111
    %p114 = scmp.ne.s32.totalorder %s97, %s113
    %p115 = scmp.eq.s32.totalorder %s16, 0
    %p116 = por %p114, %p115
    %p117 = scmp.le.s32.totalorder 1, %s10
    %p118 = scmp.lt.s32.totalorder %s10, 3
    %p119 = pnand %p117, %p118
    %p120 = pneg %p119
    // Predicated region
    $region9: #{nodeselection_forward.1} parent=5 // pred_check
      _
    $region10: #{nodeselection_forward.1} parent=5 // pred_check_branch
      %122 = sbr.rel (%p119) target = $region12
    $region11: #{nodeselection_forward.1} parent=5 // pred_region
      %s123 = ssub.s32 %s10, 1
      // Predicated region
      $region13: #{nodeselection_forward.1} parent=11 // pred_check
        %p124 = pneg %p57
      $region14: #{nodeselection_forward.1} parent=11 // pred_check_branch
        %126 = sbr.rel (%p124) target = $region16
      $region15: #{nodeselection_forward.1} parent=11 // pred_region
        _
      $region16: #{nodeselection_forward.1} parent=11 // pred_fallthru
        _
    $region12: #{nodeselection_forward.1} parent=5 // pred_fallthru
      _
    %p127 = scmp.lt.s32.totalorder %s10, 2
    // Predicated region
    $region17: #{nodeselection_forward.1} parent=5 // pred_check
      %p128 = pneg %p127
    $region18: #{nodeselection_forward.1} parent=5 // pred_check_branch
      %130 = sbr.rel (%p128) target = $region20
    $region19: #{nodeselection_forward.1} parent=5 // pred_region
      // Predicated region
      $region21: #{nodeselection_forward.1} parent=19 // pred_check
        %p131 = pneg %p30
      $region22: #{nodeselection_forward.1} parent=19 // pred_check_branch
        %133 = sbr.rel (%p131) target = $region24
      $region23: #{nodeselection_forward.1} parent=19 // pred_region
        %p134 = scmp.lt.s32.totalorder %s10, 1
        %s135 = scalar_select %p134, %s10, 1
        %s136 = smul.addr %s135, 2
        %s137 = smul.addr %s136, 8
        %s138 = scalar_lea.vmem %s0, %s137
      $region24: #{nodeselection_forward.1} parent=19 // pred_fallthru
        _
    $region20: #{nodeselection_forward.1} parent=5 // pred_fallthru
      _
    %p139 = scmp.le.s32.totalorder 1, %s10
    %p140 = scmp.lt.s32.totalorder %s10, 3
    %p141 = pnand %p139, %p140
    %p142 = pneg %p141
    // Predicated region
    $region25: #{nodeselection_forward.1} parent=5 // pred_check
      _
    $region26: #{nodeselection_forward.1} parent=5 // pred_check_branch
      %144 = sbr.rel (%p141) target = $region28
    $region27: #{nodeselection_forward.1} parent=5 // pred_region
      %s145 = ssub.s32 %s10, 1
      %p146 = scmp.lt.s32.totalorder %s15, 1
      %s147 = scalar_select %p146, %s15, 1
      %s148 = smul.addr %s147, 2
      %s149 = smul.addr %s148, 8
      %s150 = scalar_lea.vmem %s0, %s149
      %p151 = pneg %p36
      %p152 = pneg %p33
      %p153 = pneg %p57
      %p154 = pneg %p54
      %p155 = pneg %p83
      %p156 = pneg %p80
      %p157 = scmp.lt.s32.totalorder %s15, 1
      %s158 = scalar_select %p157, %s15, 1
      %s159 = smul.addr %s158, 8
      %s160 = scalar_lea.vmem %s2, %s159
      %p161 = pneg %p109
      %p162 = pneg %p106
      %p163 = scmp.lt.s32.totalorder %s15, 1
      %s164 = scalar_select %p163, %s15, 1
      %s165 = smul.addr %s164, 4
      %s166 = smul.addr %s165, 8
      %s167 = scalar_lea.vmem %s3, %s166
      %p168 = scmp.lt.s32.totalorder %s15, 1
      %s169 = scalar_select %p168, %s15, 1
      %s170 = smul.addr %s169, 2
      %s171 = smul.addr %s170, 8
      %s172 = scalar_lea.vmem %s0, %s171
      %p173 = scmp.lt.s32.totalorder %s15, 1
      %s174 = scalar_select %p173, %s15, 1
      %s175 = smul.addr %s174, 8
      %s176 = scalar_lea.vmem %s2, %s175
      %p177 = scmp.lt.s32.totalorder %s15, 1
      %s178 = scalar_select %p177, %s15, 1
      %s179 = smul.addr %s178, 4
      %s180 = smul.addr %s179, 8
      %s181 = scalar_lea.vmem %s3, %s180
      %v183 = vld [vmem:[%s172] sm:$0xff]
      %v184 = vld [vmem:[%s172 + $0x8] sm:$0xff]
      %v185 = vld [vmem:[%s1] sm:$0xf]
      %v186 = vpack.c.bf16 %v184, %v183
      %vm187 = vcmask 523264
      %v189 = vsel %vm187, %v185, 0
      %v192 = vsel %vm187, %v186, 0
      %194 = vmatprep.subr.bf16.mxu0 0
      %195 = vmatpush1.bf16.xpose.msra.mxu0 %v192
      %196 = vmatprep.subr.bf16.mxu0 0
      %197 = vmatpush1.bf16.xpose.msra.mxu0 0
      %198 = vmatprep.subr.bf16.mxu0 0
      %199 = vmatpush1.bf16.xpose.msra.mxu0 0
      %200 = vmatprep.subr.bf16.mxu0 0
      %201 = vmatpush1.bf16.xpose.msra.mxu0 0
      %202 = vmatprep.subr.bf16.mxu0 0
      %203 = vmatpush1.bf16.xpose.msra.mxu0 0
      %204 = vmatprep.subr.bf16.mxu0 0
      %205 = vmatpush1.bf16.xpose.msra.mxu0 0
      %206 = vmatprep.subr.bf16.mxu0 0
      %207 = vmatpush1.bf16.xpose.msra.mxu0 0
      %208 = vmatprep.subr.bf16.mxu0 0
      %209 = vmatpush1.bf16.xpose.msra.mxu0 0
      %210 = vmatprep.subr.bf16.mxu0 0
      %211 = vmatpush1.bf16.xpose.msra.mxu0 0
      %212 = vmatprep.subr.bf16.mxu0 0
      %213 = vmatpush1.bf16.xpose.msra.mxu0 0
      %214 = vmatprep.subr.bf16.mxu0 0
      %215 = vmatpush1.bf16.xpose.msra.mxu0 0
      %216 = vmatprep.subr.bf16.mxu0 0
      %217 = vmatpush1.bf16.xpose.msra.mxu0 0
      %218 = vmatprep.subr.bf16.mxu0 0
      %219 = vmatpush1.bf16.xpose.msra.mxu0 0
      %220 = vmatprep.subr.bf16.mxu0 0
      %221 = vmatpush1.bf16.xpose.msra.mxu0 0
      %222 = vmatprep.subr.bf16.mxu0 0
      %223 = vmatpush1.bf16.xpose.msra.mxu0 0
      %224 = vmatprep.subr.bf16.mxu0 0
      %225 = vmatpush1.bf16.xpose.msra.mxu0 0
      %226 = vmatprep.mubr.bf16.mxu0 0
      %227 = vmatmul.mubr.bf16.gmra.mrb[0].mxu0 %v189
      %v228 = vpop.f32.mrb[0].mxu0
      %v229 = vadd.f32 0.0, %v228
      %v230 = vpop.f32.mrb[0].mxu0
      %v231 = vpop.f32.mrb[0].mxu0
      %v232 = vpop.f32.mrb[0].mxu0
      %233 = vdwg.mxu0
      %vm234 = vcmask 130048
      %v235 = vsel %vm234, %v229, -inf
      %236 = vmax.xlane.f32.xlu0 %v235
      %v237 = vpop.xlane.xlu0 %236
      %v238 = vsub.f32 %v229, %v237
      %v239 = vmul.f32 %v238, 1.442695
      %v240 = vpow.pop %v239
      %v241 = vsel %vm234, %v240, 0.0
      %242 = vadd.xlane.f32.xlu0 %v241
      %v243 = vpop.xlane.xlu0 %242
      %v244 = vrcp.pop %v243
      %v245 = vmul.f32 %v240, %v244
      %v246 = vlaneseq
      %v247 = vand.u32 %v246, 127
      %v248 = vsel %vm234, %v245, -inf
      %249 = vmax.xlane.f32.xlu0 %v248
      %v250 = vpop.xlane.xlu0 %249
      %vm251 = vcmp.eq.f32.partialorder %v245, %v250
      %v252 = vsel %vm251, %v247, 16
      %v253 = vsel %vm234, %v252, 2147483647
      %v254 = vand.u32 %v253, 65535
      %v255 = vshra.s32 %v253, 16
      %v256 = vcvt.s32.f32 %v254
      %v257 = vcvt.s32.f32 %v255
      %258 = vmin.xlane.f32.xlu0 %v257
      %v259 = vpop.xlane.xlu0 %258
      %vm260 = vcmp.eq.f32.partialorder %v257, %v259
      %v261 = vsel %vm260, %v256, inf
      %262 = vmin.xlane.f32.xlu0 %v261
      %v263 = vpop.xlane.xlu0 %262
      %v264 = vcvt.f32.s32 %v263
      %v265 = vcvt.f32.s32 %v259
      %v266 = vshll.u32 %v265, 16
      %v267 = vadd.s32 %v266, %v264
      %vm268 = vcmp.eq.s32.totalorder %v247, %v267
      %v269 = vsel %vm268, -inf, %v245
      %v270 = vsel %vm234, %v269, -inf
      %271 = vmax.xlane.f32.xlu0 %v270
      %v272 = vpop.xlane.xlu0 %271
      %vm273 = vcmp.eq.f32.partialorder %v269, %v272
      %v274 = vsel %vm273, %v247, 16
      %v275 = vsel %vm234, %v274, 2147483647
      %v276 = vand.u32 %v275, 65535
      %v277 = vshra.s32 %v275, 16
      %v278 = vcvt.s32.f32 %v276
      %v279 = vcvt.s32.f32 %v277
      %280 = vmin.xlane.f32.xlu0 %v279
      %v281 = vpop.xlane.xlu0 %280
      %vm282 = vcmp.eq.f32.partialorder %v279, %v281
      %v283 = vsel %vm282, %v278, inf
      %284 = vmin.xlane.f32.xlu0 %v283
      %v285 = vpop.xlane.xlu0 %284
      %v286 = vcvt.f32.s32 %v285
      %v287 = vcvt.f32.s32 %v281
      %v288 = vshll.u32 %v287, 16
      %v289 = vadd.s32 %v288, %v286
      %vm290 = vcmp.eq.s32.totalorder %v247, %v289
      %v291 = vsel %vm290, -inf, %v269
      %v292 = vsel %vm234, %v291, -inf
      %293 = vmax.xlane.f32.xlu0 %v292
      %v294 = vpop.xlane.xlu0 %293
      %vm295 = vcmp.eq.f32.partialorder %v291, %v294
      %v296 = vsel %vm295, %v247, 16
      %v297 = vsel %vm234, %v296, 2147483647
      %v298 = vand.u32 %v297, 65535
      %v299 = vshra.s32 %v297, 16
      %v300 = vcvt.s32.f32 %v298
      %v301 = vcvt.s32.f32 %v299
      %302 = vmin.xlane.f32.xlu0 %v301
      %v303 = vpop.xlane.xlu0 %302
      %vm304 = vcmp.eq.f32.partialorder %v301, %v303
      %v305 = vsel %vm304, %v300, inf
      %306 = vmin.xlane.f32.xlu0 %v305
      %v307 = vpop.xlane.xlu0 %306
      %v308 = vcvt.f32.s32 %v307
      %v309 = vcvt.f32.s32 %v303
      %v310 = vshll.u32 %v309, 16
      %v311 = vadd.s32 %v310, %v308
      %vm312 = vcmp.eq.s32.totalorder %v247, %v311
      %v313 = vsel %vm312, -inf, %v291
      %v314 = vsel %vm234, %v313, -inf
      %315 = vmax.xlane.f32.xlu0 %v314
      %v316 = vpop.xlane.xlu0 %315
      %vm317 = vcmp.eq.f32.partialorder %v313, %v316
      %v318 = vsel %vm317, %v247, 16
      %v319 = vsel %vm234, %v318, 2147483647
      %v320 = vand.u32 %v319, 65535
      %v321 = vshra.s32 %v319, 16
      %v322 = vcvt.s32.f32 %v320
      %v323 = vcvt.s32.f32 %v321
      %324 = vmin.xlane.f32.xlu0 %v323
      %v325 = vpop.xlane.xlu0 %324
      %vm326 = vcmp.eq.f32.partialorder %v323, %v325
      %v327 = vsel %vm326, %v322, inf
      %328 = vmin.xlane.f32.xlu0 %v327
      %v329 = vpop.xlane.xlu0 %328
      %v330 = vcvt.f32.s32 %v329
      %v331 = vcvt.f32.s32 %v325
      %v332 = vshll.u32 %v331, 16
      %v333 = vadd.s32 %v332, %v330
      %vm334 = vcmask 7168
      %v335 = vsel %vm334, %v267, %v289
      %vm336 = vcmask 15360
      %v337 = vsel %vm336, %v335, %v311
      %vm338 = vcmask 23552
      %v339 = vsel %vm338, %v337, %v333
      %vm340 = vcmask 31744
      %341 = vst.msk [vmem:[%s176] sm:$0xff] %vm340, %v339
      %342 = vset.pattern.permute.xlu0 0
      %343 = vperm.xlu0 %342, %v267
      %v344 = vpop.permute.xlu0 %343
      %345 = vset.pattern.permute.xlu0 0
      %346 = vperm.xlu0 %345, %v289
      %v347 = vpop.permute.xlu0 %346
      %348 = vset.pattern.permute.xlu0 0
      %349 = vperm.xlu0 %348, %v311
      %v350 = vpop.permute.xlu0 %349
      %351 = vset.pattern.permute.xlu0 0
      %352 = vperm.xlu0 %351, %v333
      %v353 = vpop.permute.xlu0 %352
      %vm354 = vcmp.eq.s32.totalorder %v247, %v344
      %vm355 = vcmp.eq.s32.totalorder %v247, %v347
      %vm356 = vcmp.eq.s32.totalorder %v247, %v350
      %vm357 = vcmp.eq.s32.totalorder %v247, %v353
      %v358 = vsel %vm354, 1, 0
      %v359 = vsel %vm355, 1, 0
      %v360 = vsel %vm356, 1, 0
      %v361 = vsel %vm357, 1, 0
      %v362 = vcvt.s32.f32 %v358
      %v363 = vcvt.s32.f32 %v359
      %v364 = vcvt.s32.f32 %v360
      %v365 = vcvt.s32.f32 %v361
      %v367 = vsel %vm234, %v362, 0
      %v370 = vsel %vm234, %v363, 0
      %v373 = vsel %vm234, %v364, 0
      %v376 = vsel %vm234, %v365, 0
      %378 = vmatprep.subr.mxu0 0.0
      %379 = vmatpush1.msra.mxu0 %v183
      %380 = vmatprep.subr.mxu0 0.0
      %381 = vmatpush1.msra.mxu0 %v184
      %382 = vmatprep.subr.mxu0 0.0
      %383 = vmatpush1.msra.mxu0 0.0
      %384 = vmatprep.subr.mxu0 0.0
      %385 = vmatpush1.msra.mxu0 0.0
      %386 = vmatprep.subr.mxu0 0.0
      %387 = vmatpush1.msra.mxu0 0.0
      %388 = vmatprep.subr.mxu0 0.0
      %389 = vmatpush1.msra.mxu0 0.0
      %390 = vmatprep.subr.mxu0 0.0
      %391 = vmatpush1.msra.mxu0 0.0
      %392 = vmatprep.subr.mxu0 0.0
      %393 = vmatpush1.msra.mxu0 0.0
      %394 = vmatprep.subr.mxu0 0.0
      %395 = vmatpush1.msra.mxu0 0.0
      %396 = vmatprep.subr.mxu0 0.0
      %397 = vmatpush1.msra.mxu0 0.0
      %398 = vmatprep.subr.mxu0 0.0
      %399 = vmatpush1.msra.mxu0 0.0
      %400 = vmatprep.subr.mxu0 0.0
      %401 = vmatpush1.msra.mxu0 0.0
      %402 = vmatprep.subr.mxu0 0.0
      %403 = vmatpush1.msra.mxu0 0.0
      %404 = vmatprep.subr.mxu0 0.0
      %405 = vmatpush1.msra.mxu0 0.0
      %406 = vmatprep.subr.mxu0 0.0
      %407 = vmatpush1.msra.mxu0 0.0
      %408 = vmatprep.subr.mxu0 0.0
      %409 = vmatpush1.msra.mxu0 0.0
      %410 = vmatprep.subr.mxu0 0.0
      %411 = vmatpush1.msra.mxu0 0.0
      %412 = vmatprep.subr.mxu0 0.0
      %413 = vmatpush1.msra.mxu0 0.0
      %414 = vmatprep.subr.mxu0 0.0
      %415 = vmatpush1.msra.mxu0 0.0
      %416 = vmatprep.subr.mxu0 0.0
      %417 = vmatpush1.msra.mxu0 0.0
      %418 = vmatprep.subr.mxu0 0.0
      %419 = vmatpush1.msra.mxu0 0.0
      %420 = vmatprep.subr.mxu0 0.0
      %421 = vmatpush1.msra.mxu0 0.0
      %422 = vmatprep.subr.mxu0 0.0
      %423 = vmatpush1.msra.mxu0 0.0
      %424 = vmatprep.subr.mxu0 0.0
      %425 = vmatpush1.msra.mxu0 0.0
      %426 = vmatprep.subr.mxu0 0.0
      %427 = vmatpush1.msra.mxu0 0.0
      %428 = vmatprep.subr.mxu0 0.0
      %429 = vmatpush1.msra.mxu0 0.0
      %430 = vmatprep.subr.mxu0 0.0
      %431 = vmatpush1.msra.mxu0 0.0
      %432 = vmatprep.subr.mxu0 0.0
      %433 = vmatpush1.msra.mxu0 0.0
      %434 = vmatprep.subr.mxu0 0.0
      %435 = vmatpush1.msra.mxu0 0.0
      %436 = vmatprep.subr.mxu0 0.0
      %437 = vmatpush1.msra.mxu0 0.0
      %438 = vmatprep.subr.mxu0 0.0
      %439 = vmatpush1.msra.mxu0 0.0
      %440 = vmatprep.subr.mxu0 0.0
      %441 = vmatpush1.msra.mxu0 0.0
      %442 = vmatprep.mubr.f32.mxu0 0.0
      %443 = vmatmul.mubr.f32.gmra.mrb[0].mxu0 %v367
      %v444 = vpop.f32.mrb[0].mxu0
      %v445 = vadd.f32 0.0, %v444
      %v446 = vpop.f32.mrb[0].mxu0
      %447 = vmatprep.mubr.f32.mxu0 0.0
      %448 = vmatmul.mubr.f32.gmra.mrb[0].mxu0 %v370
      %v449 = vpop.f32.mrb[0].mxu0
      %v450 = vadd.f32 0.0, %v449
      %v451 = vpop.f32.mrb[0].mxu0
      %452 = vmatprep.mubr.f32.mxu0 0.0
      %453 = vmatmul.mubr.f32.gmra.mrb[0].mxu0 %v373
      %v454 = vpop.f32.mrb[0].mxu0
      %v455 = vadd.f32 0.0, %v454
      %v456 = vpop.f32.mrb[0].mxu0
      %457 = vmatprep.mubr.f32.mxu0 0.0
      %458 = vmatmul.mubr.f32.gmra.mrb[0].mxu0 %v376
      %v459 = vpop.f32.mrb[0].mxu0
      %v460 = vadd.f32 0.0, %v459
      %v461 = vpop.f32.mrb[0].mxu0
      %462 = vdwg.mxu0
      %463 = vst.msk [vmem:[%s181] sm:$0xff] %vm187, %v445
      %464 = vst.msk [vmem:[%s181 + $0x8] sm:$0xff] %vm187, %v450
      %465 = vst.msk [vmem:[%s181 + $0x10] sm:$0xff] %vm187, %v455
      %466 = vst.msk [vmem:[%s181 + $0x18] sm:$0xff] %vm187, %v460
      %p467 = scmp.lt.s32.totalorder %s15, 1
      %s468 = scalar_select %p467, %s15, 1
      %s469 = smul.addr %s468, 8
      %s470 = scalar_lea.vmem %s2, %s469
      %p471 = scmp.lt.s32.totalorder %s15, 1
      %s472 = scalar_select %p471, %s15, 1
      %s473 = smul.addr %s472, 4
      %s474 = smul.addr %s473, 8
      %s475 = scalar_lea.vmem %s3, %s474
      // Predicated region
      $region29: #{nodeselection_forward.1} parent=27 // pred_check
        %p476 = pneg %p80
      $region30: #{nodeselection_forward.1} parent=27 // pred_check_branch
        %478 = sbr.rel (%p476) target = $region32
      $region31: #{nodeselection_forward.1} parent=27 // pred_region
        _
      $region32: #{nodeselection_forward.1} parent=27 // pred_fallthru
        _
      // Predicated region
      $region33: #{nodeselection_forward.1} parent=27 // pred_check
        %p479 = pneg %p106
      $region34: #{nodeselection_forward.1} parent=27 // pred_check_branch
        %481 = sbr.rel (%p479) target = $region36
      $region35: #{nodeselection_forward.1} parent=27 // pred_region
        _
      $region36: #{nodeselection_forward.1} parent=27 // pred_fallthru
        _
    $region28: #{nodeselection_forward.1} parent=5 // pred_fallthru
      _
    %p482 = scmp.le.s32.totalorder 2, %s10
    // Predicated region
    $region37: #{nodeselection_forward.1} parent=5 // pred_check
      %p483 = pneg %p482
    $region38: #{nodeselection_forward.1} parent=5 // pred_check_branch
      %485 = sbr.rel (%p483) target = $region40
    $region39: #{nodeselection_forward.1} parent=5 // pred_region
      %s486 = ssub.s32 %s10, 2
      // Predicated region
      $region41: #{nodeselection_forward.1} parent=39 // pred_check
        %p487 = pneg %p86
      $region42: #{nodeselection_forward.1} parent=39 // pred_check_branch
        %489 = sbr.rel (%p487) target = $region44
      $region43: #{nodeselection_forward.1} parent=39 // pred_region
        %p490 = scmp.lt.s32.totalorder %s16, 1
        %s491 = scalar_select %p490, %s16, 1
        %s492 = smul.addr %s491, 8
        %s493 = scalar_lea.vmem %s2, %s492
      $region44: #{nodeselection_forward.1} parent=39 // pred_fallthru
        _
      // Predicated region
      $region45: #{nodeselection_forward.1} parent=39 // pred_check
        %p494 = pneg %p112
      $region46: #{nodeselection_forward.1} parent=39 // pred_check_branch
        %496 = sbr.rel (%p494) target = $region48
      $region47: #{nodeselection_forward.1} parent=39 // pred_region
        %p497 = scmp.lt.s32.totalorder %s16, 1
        %s498 = scalar_select %p497, %s16, 1
        %s499 = smul.addr %s498, 4
        %s500 = smul.addr %s499, 8
        %s501 = scalar_lea.vmem %s3, %s500
      $region48: #{nodeselection_forward.1} parent=39 // pred_fallthru
        _
    $region40: #{nodeselection_forward.1} parent=5 // pred_fallthru
      _
  $region6: #{nodeselection_forward.1} parent=0 // loop_footer
    %s14 = sadd.s32 1, %s10
  $region7: #{nodeselection_forward.1} parent=0 // loop_footer_branch
    %9 = sbr.rel target = $region3
  $region8: #{nodeselection_forward.1} parent=0 // loop_exit
    _

</llo_original>
